<compile_context>
chip_gen: v7x
topology: tpu7x:2x2x1
jax: 0.10.0
libtpu: 0.0.40
codegen_flags: <defaults>
</compile_context>

<pallas_src>
import numpy as np

import jax
import jax.numpy as jnp
from jax.experimental import pallas as pl
from jax.experimental.pallas import tpu as pltpu

COMPUTE_DTYPE = jnp.bfloat16   # MXU operand dtype (x, W)
OUT_DTYPE = jnp.bfloat16       # kernel output dtype (f32 accumulation inside)
# NOTE: results intentionally deviate from PyTorch f32 nn.Linear at ~1e-3
# relative error due to bf16 MXU operands + bf16 output (documented choice).


# ---------------------------------------------------------------------------
# helpers: padding / tile planning
# ---------------------------------------------------------------------------
def _round_up(x, m):
    return ((x + m - 1) // m) * m


def _plan_rows(r, cap=512):
    """Rows padded to a multiple of 16 (bf16 sublane packing); keep a single
    row tile whenever it fits under `cap` so W is streamed from HBM once."""
    r16 = _round_up(max(int(r), 1), 16)
    if r16 <= cap:
        return r16, r16
    r_pad = _round_up(int(r), cap)
    return r_pad, cap


def _plan_cols(d, max_tile=512):
    """Column dim padded to a multiple of 128; tile divides the padded dim,
    preferring 256-aligned tiles (v6e/v7x MXU is 2x256x256)."""
    d_pad = _round_up(max(int(d), 1), 128)
    if d_pad <= max_tile:
        return d_pad, d_pad
    for step in (256, 128):
        t = (max_tile // step) * step
        while t >= step:
            if d_pad % t == 0:
                return d_pad, t
            t -= step
    return d_pad, 128


# ---------------------------------------------------------------------------
# Pallas kernels: y[c] = (x[c] @ w[c] + b[c]) * mask[c]   (stacked over C)
# ---------------------------------------------------------------------------
def _proj_kernel_1k(x_ref, w_ref, b_ref, m_ref, o_ref):
    # Single K step: no accumulator scratch, direct masked store.
    y = jnp.dot(x_ref[0], w_ref[0], preferred_element_type=jnp.float32)
    o_ref[0] = ((y + b_ref[0]) * m_ref[0]).astype(o_ref.dtype)


def _proj_kernel_mk(x_ref, w_ref, b_ref, m_ref, o_ref, acc_ref):
    # grid = (cond, row_tile, col_tile, k_tile); K (reduction) is last.
    k = pl.program_id(3)

    @pl.when(k == 0)
    def _init():
        acc_ref[...] = jnp.zeros_like(acc_ref)

    acc_ref[...] += jnp.dot(x_ref[0], w_ref[0],
                            preferred_element_type=jnp.float32)

    @pl.when(k == pl.num_programs(3) - 1)
    def _finalize():
        o_ref[0] = ((acc_ref[...] + b_ref[0]) * m_ref[0]).astype(o_ref.dtype)


def fused_output_proj(xp, wp, bp, mp, *, TM, TN, TK, out_dtype=OUT_DTYPE):
    """Batched masked linear projection over a stack of conditioners.

    xp: [C, R_pad, K_pad] bf16   gathered + padded token embeddings
    wp: [C, K_pad, D_pad] bf16   pre-stacked, pre-padded weights (init-time)
    bp: [C, 1, D_pad]     f32    pre-stacked, pre-padded bias      (init-time)
    mp: [C, R_pad, 1]     f32    0/1 row padding mask
    returns padded [C, R_pad, D_pad] in out_dtype (caller slices per attr).
    """
    C, R_pad, K_pad = xp.shape
    D_pad = wp.shape[2]
    n_k = K_pad // TK

    if n_k == 1:
        grid = (C, R_pad // TM, D_pad // TN)
        return pl.pallas_call(
            _proj_kernel_1k,
            out_shape=jax.ShapeDtypeStruct((C, R_pad, D_pad), out_dtype),
            grid_spec=pltpu.PrefetchScalarGridSpec(
                num_scalar_prefetch=0,
                grid=grid,
                in_specs=[
                    pl.BlockSpec((1, TM, K_pad), lambda c, i, j: (c, i, 0)),
                    pl.BlockSpec((1, K_pad, TN), lambda c, i, j: (c, 0, j)),
                    pl.BlockSpec((1, 1, TN), lambda c, i, j: (c, 0, j)),
                    pl.BlockSpec((1, TM, 1), lambda c, i, j: (c, i, 0)),
                ],
                out_specs=pl.BlockSpec((1, TM, TN), lambda c, i, j: (c, i, j)),
            ),
            compiler_params=pltpu.CompilerParams(
                dimension_semantics=("parallel", "parallel", "parallel"),
                vmem_limit_bytes=32 * 1024 * 1024,  # safe on v7x (64 MiB/TC)
            ),
        )(xp, wp, bp, mp)

    grid = (C, R_pad // TM, D_pad // TN, n_k)
    return pl.pallas_call(
        _proj_kernel_mk,
        out_shape=jax.ShapeDtypeStruct((C, R_pad, D_pad), out_dtype),
        grid_spec=pltpu.PrefetchScalarGridSpec(
            num_scalar_prefetch=0,
            grid=grid,
            in_specs=[
                pl.BlockSpec((1, TM, TK), lambda c, i, j, k: (c, i, k)),
                pl.BlockSpec((1, TK, TN), lambda c, i, j, k: (c, k, j)),
                pl.BlockSpec((1, 1, TN), lambda c, i, j, k: (c, 0, j)),
                pl.BlockSpec((1, TM, 1), lambda c, i, j, k: (c, i, 0)),
            ],
            out_specs=pl.BlockSpec((1, TM, TN), lambda c, i, j, k: (c, i, j)),
            scratch_shapes=[pltpu.VMEM((TM, TN), jnp.float32)],
        ),
        compiler_params=pltpu.CompilerParams(
            dimension_semantics=("parallel", "parallel", "parallel",
                                 "arbitrary"),
            vmem_limit_bytes=32 * 1024 * 1024,
        ),
    )(xp, wp, bp, mp)


# ---------------------------------------------------------------------------
# Synthetic LUT-style TextConditioner params (embedding LUT + output_proj)
# ---------------------------------------------------------------------------
class LUTConditionerParams:
    def __init__(self, key, vocab_size, dim, output_dim):
        k1, k2, k3 = jax.random.split(key, 3)
        # LUT stored in bf16: gather output is already in compute dtype.
        self.emb = (jax.random.normal(k1, (vocab_size, dim), jnp.float32)
                    * 0.02).astype(COMPUTE_DTYPE)
        bound = 1.0 / (dim ** 0.5)
        # nn.Linear(dim, output_dim) has weight [output_dim, dim]; store it
        # pre-transposed ONCE as [dim, output_dim] (no per-forward .T).
        self.w_t = jax.random.uniform(k2, (dim, output_dim), jnp.float32,
                                      minval=-bound, maxval=bound)
        self.b = jax.random.uniform(k3, (output_dim,), jnp.float32,
                                    minval=-bound, maxval=bound)
        self.dim = dim
        self.output_dim = output_dim


class ConditioningProviderJAX:
    """JAX/Pallas analogue of ConditioningProvider.forward: maps each
    attribute's tokenized inputs through its conditioner, returning
    {attr: (cond, mask)}.  Conditioners sharing (dim, output_dim) run in ONE
    fused pallas_call; their padded/cast/stacked weights are built at init."""

    def __init__(self, conditioners, *, max_col_tile=512):
        self.conditioners = dict(conditioners)

        # ---- init-time weight hoist: group by (dim, output_dim) ----
        by_shape = {}
        for name, c in self.conditioners.items():
            by_shape.setdefault((c.dim, c.output_dim), []).append(name)

        self._groups = {}
        for (dim, D), attrs in by_shape.items():
            K_pad, TK = _plan_cols(dim, max_col_tile)
            D_pad, TN = _plan_cols(D, max_col_tile)
            C = len(attrs)
            W = jnp.zeros((C, K_pad, D_pad), COMPUTE_DTYPE)
            Bv = jnp.zeros((C, 1, D_pad), jnp.float32)
            for i, a in enumerate(attrs):
                c = self.conditioners[a]
                W = W.at[i, :dim, :D].set(c.w_t.astype(COMPUTE_DTYPE))
                Bv = Bv.at[i, 0, :D].set(c.b.astype(jnp.float32))
            self._groups[(dim, D)] = dict(
                attrs=tuple(attrs),
                index={a: i for i, a in enumerate(attrs)},
                dim=dim, D=D, K_pad=K_pad, TK=TK, D_pad=D_pad, TN=TN,
                W=jax.device_put(W), b=jax.device_put(Bv),
            )
        # TODO(synk): for many tiny conditioners, pad all groups to one common
        # (K_pad, D_pad) at init so the whole forward is a single pallas_call.

    def forward(self, tokenized):
        output = {}

        # Group the tokenized attributes the same way as at init.
        requested = {}
        for attr in tokenized:
            c = self.conditioners[attr]
            requested.setdefault((c.dim, c.output_dim), []).append(attr)

        for key, attrs in requested.items():
            g = self._groups[key]
            dim, D = g["dim"], g["D"]
            K_pad, D_pad, TK, TN = g["K_pad"], g["D_pad"], g["TK"], g["TN"]

            if tuple(attrs) == g["attrs"]:
                W, Bv = g["W"], g["b"]          # zero-copy fast path (common)
            else:                               # rare: subset of the group
                sel = np.asarray([g["index"][a] for a in attrs], np.int32)
                W, Bv = g["W"][sel], g["b"][sel]

            shapes = {a: tokenized[a][0].shape for a in attrs}
            r_max = max(bt[0] * bt[1] for bt in shapes.values())
            R_pad, TM = _plan_rows(r_max)

            xs, ms = [], []
            for a in attrs:
                tokens, mask = tokenized[a]
                bsz, t = shapes[a]
                r = bsz * t
                cond = self.conditioners[a]
                # Embedding gather stays in XLA (bf16 LUT -> no extra cast).
                # TODO(synk): fuse the gather into the kernel via scalar-
                # prefetched token ids + manual DMA gather from an HBM emb ref.
                x = jnp.take(cond.emb, tokens.reshape(-1), axis=0)  # [r, dim]
                xs.append(jnp.zeros((R_pad, K_pad), COMPUTE_DTYPE)
                          .at[:r, :dim].set(x))
                ms.append(jnp.zeros((R_pad, 1), jnp.float32)
                          .at[:r, 0].set(mask.reshape(-1).astype(jnp.float32)))

            X = jnp.stack(xs)   # [C, R_pad, K_pad] bf16
            M = jnp.stack(ms)   # [C, R_pad, 1]     f32

            Y = fused_output_proj(X, W, Bv, M, TM=TM, TN=TN, TK=TK)

            # Single slice per attribute directly from the padded slab.
            for ci, a in enumerate(attrs):
                tokens, mask = tokenized[a]
                bsz, t = shapes[a]
                cond_out = Y[ci, :bsz * t, :D].reshape(bsz, t, D)
                output[a] = (cond_out, mask.astype(jnp.float32))

        return output


# ---------------------------------------------------------------------------
if __name__ == "__main__":
    key = jax.random.PRNGKey(0)
    k_genre, k_desc, k_bpm, k_tok1, k_tok2, k_tok3 = jax.random.split(key, 6)

    B = 2
    vocab = 128

    # three conditioners; "genre"/"description" share (dim=32, D=128) and run
    # in one fused call, "bpm" (dim=64, D=256) exercises a second group.
    provider = ConditioningProviderJAX({
        "genre": LUTConditionerParams(k_genre, vocab, 32, 128),
        "description": LUTConditionerParams(k_desc, vocab, 32, 128),
        "bpm": LUTConditionerParams(k_bpm, 64, 64, 256),
    })

    genre_tokens = jax.random.randint(k_tok1, (B, 1), 0, vocab, dtype=jnp.int32)
    genre_mask = jnp.ones((B, 1), jnp.float32)

    T_desc = 8
    desc_tokens = jax.random.randint(k_tok2, (B, T_desc), 0, vocab,
                                     dtype=jnp.int32)
    desc_mask = jnp.stack([
        jnp.ones((T_desc,), jnp.float32),
        jnp.concatenate([jnp.ones((T_desc - 3,), jnp.float32),
                         jnp.zeros((3,), jnp.float32)]),
    ], axis=0)

    bpm_tokens = jax.random.randint(k_tok3, (B, 2), 0, 64, dtype=jnp.int32)
    bpm_mask = jnp.ones((B, 2), jnp.float32)

    tokenized = {
        "genre": (genre_tokens, genre_mask),
        "description": (desc_tokens, desc_mask),
        "bpm": (bpm_tokens, bpm_mask),
    }

    out = provider.forward(tokenized)

    # reference check (same bf16 operand rounding as the kernel's MXU path;
    # output is bf16, so compare at bf16-level tolerance)
    ok = True
    for attr, (cond, mask) in out.items():
        cond = jax.block_until_ready(cond)
        p = provider.conditioners[attr]
        toks, m = tokenized[attr]
        Do = p.output_dim
        x_ref = jnp.take(p.emb, toks.reshape(-1), axis=0).astype(jnp.float32)
        w_ref = p.w_t.astype(jnp.bfloat16).astype(jnp.float32)
        ref = (x_ref @ w_ref + p.b).reshape(toks.shape[0], toks.shape[1], Do)
        ref = ref * m[..., None]
        if not jnp.allclose(cond.astype(jnp.float32), ref,
                            atol=2e-2, rtol=2e-2):
            ok = False
        if cond.shape != (toks.shape[0], toks.shape[1], Do):
            ok = False
        if mask.shape != toks.shape:
            ok = False

    # TODO(synk): tokenize() / _collate_text / _collate_wavs /
    # _collate_joint_embeds are host-side string/list collation with no tensor
    # compute -- not representable as a kernel.

    if ok:
        print("KERNEL_OK")
</pallas_src>

<mosaic_0001>
module attributes {stable_mosaic.version = 11 : i64} {
  func.func @_proj_kernel_1k(%arg0: i32, %arg1: i32, %arg2: i32, %arg3: memref<1x16x128xbf16, #tpu.memory_space<vmem>>, %arg4: memref<1x128x128xbf16, #tpu.memory_space<vmem>>, %arg5: memref<1x1x128xf32, #tpu.memory_space<vmem>>, %arg6: memref<1x16x1xf32, #tpu.memory_space<vmem>>, %arg7: memref<1x16x128xbf16, #tpu.memory_space<vmem>>) attributes {dimension_semantics = [#tpu.dimension_semantics<parallel>, #tpu.dimension_semantics<parallel>, #tpu.dimension_semantics<parallel>], iteration_bounds = array<i64: 2, 1, 1>, scalar_prefetch = 0 : i64, scratch_operands = 0 : i64, tpu.core_type = #tpu.core_type<tc>, window_params = [{transform_indices = @transform_0, window_bounds = array<i64: 1, 16, 128>}, {transform_indices = @transform_1, window_bounds = array<i64: 1, 128, 128>}, {transform_indices = @transform_2, window_bounds = array<i64: 1, 1, 128>}, {transform_indices = @transform_3, window_bounds = array<i64: 1, 16, 1>}, {transform_indices = @transform_4, window_bounds = array<i64: 1, 16, 128>}]} {
    %c0 = arith.constant 0 : index
    %c0_0 = arith.constant 0 : index
    %c0_1 = arith.constant 0 : index
    %0 = vector.load %arg3[%c0, %c0_0, %c0_1] : memref<1x16x128xbf16, #tpu.memory_space<vmem>>, vector<1x16x128xbf16>
    %1 = vector.shape_cast %0 : vector<1x16x128xbf16> to vector<16x128xbf16>
    %c0_2 = arith.constant 0 : index
    %c0_3 = arith.constant 0 : index
    %c0_4 = arith.constant 0 : index
    %2 = vector.load %arg4[%c0_2, %c0_3, %c0_4] : memref<1x128x128xbf16, #tpu.memory_space<vmem>>, vector<1x128x128xbf16>
    %3 = vector.shape_cast %2 : vector<1x128x128xbf16> to vector<128x128xbf16>
    %cst = arith.constant dense<0.000000e+00> : vector<16x128xf32>
    %4 = tpu.matmul %1, %3, %cst {dimension_numbers = #tpu.dot_dimension_numbers<[1], [0], [0], [1], [0, 0, 1, 1], [], []>} : vector<16x128xbf16>, vector<128x128xbf16>, vector<16x128xf32> -> vector<16x128xf32>
    %c0_5 = arith.constant 0 : index
    %c0_6 = arith.constant 0 : index
    %c0_7 = arith.constant 0 : index
    %5 = vector.load %arg5[%c0_5, %c0_6, %c0_7] : memref<1x1x128xf32, #tpu.memory_space<vmem>>, vector<1x1x128xf32>
    %6 = vector.shape_cast %5 : vector<1x1x128xf32> to vector<1x128xf32>
    %7 = vector.broadcast %6 : vector<1x128xf32> to vector<16x128xf32>
    %8 = arith.addf %4, %7 : vector<16x128xf32>
    %c0_8 = arith.constant 0 : index
    %c0_9 = arith.constant 0 : index
    %c0_10 = arith.constant 0 : index
    %9 = vector.load %arg6[%c0_8, %c0_9, %c0_10] : memref<1x16x1xf32, #tpu.memory_space<vmem>>, vector<1x16x1xf32>
    %10 = vector.shape_cast %9 : vector<1x16x1xf32> to vector<16x1xf32>
    %11 = vector.broadcast %10 : vector<16x1xf32> to vector<16x128xf32>
    %12 = arith.mulf %8, %11 : vector<16x128xf32>
    %13 = arith.truncf %12 : vector<16x128xf32> to vector<16x128xbf16>
    %c0_11 = arith.constant 0 : index
    %c0_12 = arith.constant 0 : index
    %c0_13 = arith.constant 0 : index
    %14 = vector.load %arg7[%c0_11, %c0_12, %c0_13] : memref<1x16x128xbf16, #tpu.memory_space<vmem>>, vector<1x16x128xbf16>
    %15 = vector.shape_cast %14 : vector<1x16x128xbf16> to vector<16x128xbf16>
    %16 = vector.shape_cast %13 : vector<16x128xbf16> to vector<1x16x128xbf16>
    tpu.vector_store %arg7[%c0_11, %c0_12, %c0_13], %16 {strides = array<i32>} : memref<1x16x128xbf16, #tpu.memory_space<vmem>>, vector<1x16x128xbf16>,
    return
  }
  func.func @transform_0(%arg0: i32, %arg1: i32, %arg2: i32) -> (i32, i32, i32) {
    %c0_i32 = arith.constant 0 : i32
    %c0_i32_0 = arith.constant 0 : i32
    return %arg0, %arg1, %c0_i32 : i32, i32, i32
  }
  func.func @transform_1(%arg0: i32, %arg1: i32, %arg2: i32) -> (i32, i32, i32) {
    %c0_i32 = arith.constant 0 : i32
    %c0_i32_0 = arith.constant 0 : i32
    return %arg0, %c0_i32, %arg2 : i32, i32, i32
  }
  func.func @transform_2(%arg0: i32, %arg1: i32, %arg2: i32) -> (i32, i32, i32) {
    %c0_i32 = arith.constant 0 : i32
    %c0_i32_0 = arith.constant 0 : i32
    return %arg0, %c0_i32, %arg2 : i32, i32, i32
  }
  func.func @transform_3(%arg0: i32, %arg1: i32, %arg2: i32) -> (i32, i32, i32) {
    %c0_i32 = arith.constant 0 : i32
    %c0_i32_0 = arith.constant 0 : i32
    return %arg0, %arg1, %c0_i32 : i32, i32, i32
  }
  func.func @transform_4(%arg0: i32, %arg1: i32, %arg2: i32) -> (i32, i32, i32) {
    %c0_i32 = arith.constant 0 : i32
    return %arg0, %arg1, %arg2 : i32, i32, i32
  }
}

</mosaic_0001>

<llo_original>
// kernel: tpu_custom_call.1
$region0: #{tpu_custom_call.1}
  #allocation0 [shape = 'u32[]', space=smem, size = 0x4, offset = 0x4, fixed_abs, tag = 'smem constant byte address 0x4 - core index']
  #allocation1 [shape = 'u32[144,128]{1,0:T(1,128)}', space=vmem, size = 0x12000, scoped, tag = 'internal scratch']
  %s0 = inlined_call_operand.vmem [shape: bf16[2,16,128], index: 0, kind: input, shape index: {}]
  %s1 = inlined_call_operand.hbm [shape: bf16[2,128,128], index: 1, kind: input, shape index: {}]
  %s2 = inlined_call_operand.vmem [shape: f32[2,1,128], index: 2, kind: input, shape index: {}]
  %s3 = inlined_call_operand.vmem [shape: f32[2,16,1], index: 3, kind: input, shape index: {}]
  %s4 = inlined_call_operand.hbm [shape: bf16[2,16,128], index: 4, kind: output, shape index: {}]
  %s5 = sld [smem:[#allocation0]]
  $region53: #{tpu_custom_call.1} parent=0
    _
  %s7 = ssub.s32 1, %s5
  %s8 = scalar_select 0, %s7, %s5
  $region1: #{tpu_custom_call.1} parent=0
    #allocation2 [shape = 'u8[65536]{0}', space=vmem, size = 0x10000, scoped, tag = 'input window, operand 1']
    #allocation3 [shape = 's32[2]{0}', space=sflag, size = 0x8, scoped, tag = 'scoped memory for tpu_custom_call.1']
    #allocation4 [shape = 's32[2]{0}', space=sflag, size = 0x8, scoped, tag = 'scoped memory for tpu_custom_call.1']
    #allocation5 [shape = 'u8[8192]{0}', space=vmem, size = 0x2000, scoped, tag = 'output window, operand 0']
    %9 = vsyncpa [#allocation3], 0
    %s10 = scalar_lea.sflag [#allocation3], 1
    %11 = vsyncpa %s10, 0
    %12 = vsyncpa [#allocation4], 0
    %s13 = scalar_lea.sflag [#allocation4], 1
    %14 = vsyncpa %s13, 0
    loop: start=0, step=1, limit=4
    $region2: #{tpu_custom_call.1} parent=1 // loop_pre_header
      _
    $region3: #{tpu_custom_call.1} parent=1 // loop_header
      %s16 = sphi 0, %s20
      %p17 = scmp.ge.s32.totalorder %s16, 4
      %s23 = sphi 0, %s42
      %s24 = sphi 0, %s38
      %s25 = sphi 0, %s34
      %s26 = sphi 0, %s23
      %s27 = sphi 0, %s24
      %s28 = sphi 0, %s25
      %s29 = sphi 0, %s26
      %s30 = sphi 0, %s27
      %s31 = sphi 0, %s28
      %s47 = sphi 0, %s49
      %s50 = sphi 0, %s47
      %s51 = sphi 0, %s50
      %s67 = sphi 0, %s51
      %s75 = sphi 0, %s77
      %s78 = sphi 0, %s75
      %s79 = sphi 0, %s78
      %s95 = sphi 0, %s79
      %s103 = sphi 0, %s105
      %s106 = sphi 0, %s103
      %s107 = sphi 0, %s106
      %s123 = sphi 0, %s107
      %s131 = sphi 0, %s133
      %s134 = sphi 0, %s131
      %s135 = sphi 0, %s134
      %s151 = sphi 0, %s135
      %s161 = sphi 0, %s163
      %s164 = sphi 0, %s161
      %s165 = sphi 0, %s164
      %s181 = sphi 0, %s165
    $region4: #{tpu_custom_call.1} parent=1 // loop_header_branch
      %19 = sbr.rel (%p17) target = $region8
    $region5: #{tpu_custom_call.1} parent=1 // loop_body
      %s21 = ssub.s32 %s16, 1
      %s22 = ssub.s32 %s16, 2
      %s32 = sadd.s32 1, %s25
      %p33 = scmp.ge.s32.totalorder %s32, 1
      %s34 = scalar_select %p33, 0, %s32
      %s35 = sadd.s32 1, %s24
      %s36 = scalar_select %p33, %s35, %s24
      %p37 = scmp.ge.s32.totalorder %s36, 1
      %s38 = scalar_select %p37, 0, %s36
      %s39 = sadd.s32 1, %s23
      %s40 = scalar_select %p37, %s39, %s23
      %p41 = scmp.ge.s32.totalorder %s40, 2
      %s42 = scalar_select %p41, 0, %s40
      %s43 = ssub.s32 %s23, %s42
      %s44 = ssub.s32 %s24, %s38
      %s45 = sor.u32 %s43, %s44
      %p46 = scmp.eq.s32.totalorder %s45, 0
      %s48 = sadd.s32 %s47, 1
      %s49 = scalar_select %p46, %s47, %s48
      %p52 = pneg %p46
      %p53 = scmp.eq.s32.totalorder %s16, 1
      %p54 = por %p52, %p53
      %p55 = scmp.ne.s32.totalorder %s47, %s50
      %p56 = scmp.eq.s32.totalorder %s16, 0
      %p57 = por %p55, %p56
      %p58 = scmp.ne.s32.totalorder %s47, %s50
      %p59 = scmp.eq.s32.totalorder %s21, 1
      %p60 = por %p58, %p59
      %p61 = scmp.ne.s32.totalorder %s50, %s51
      %p62 = scmp.eq.s32.totalorder %s21, 0
      %p63 = por %p61, %p62
      %p64 = scmp.ne.s32.totalorder %s50, %s51
      %p65 = scmp.eq.s32.totalorder %s22, 1
      %p66 = por %p64, %p65
      %p68 = scmp.ne.s32.totalorder %s51, %s67
      %p69 = scmp.eq.s32.totalorder %s22, 0
      %p70 = por %p68, %p69
      %s71 = ssub.s32 %s23, %s42
      %s72 = ssub.s32 %s25, %s34
      %s73 = sor.u32 %s71, %s72
      %p74 = scmp.eq.s32.totalorder %s73, 0
      %s76 = sadd.s32 %s75, 1
      %s77 = scalar_select %p74, %s75, %s76
      %p80 = pneg %p74
      %p81 = scmp.eq.s32.totalorder %s16, 1
      %p82 = por %p80, %p81
      %p83 = scmp.ne.s32.totalorder %s75, %s78
      %p84 = scmp.eq.s32.totalorder %s16, 0
      %p85 = por %p83, %p84
      %p86 = scmp.ne.s32.totalorder %s75, %s78
      %p87 = scmp.eq.s32.totalorder %s21, 1
      %p88 = por %p86, %p87
      %p89 = scmp.ne.s32.totalorder %s78, %s79
      %p90 = scmp.eq.s32.totalorder %s21, 0
      %p91 = por %p89, %p90
      %p92 = scmp.ne.s32.totalorder %s78, %s79
      %p93 = scmp.eq.s32.totalorder %s22, 1
      %p94 = por %p92, %p93
      %p96 = scmp.ne.s32.totalorder %s79, %s95
      %p97 = scmp.eq.s32.totalorder %s22, 0
      %p98 = por %p96, %p97
      %s99 = ssub.s32 %s23, %s42
      %s100 = ssub.s32 %s25, %s34
      %s101 = sor.u32 %s99, %s100
      %p102 = scmp.eq.s32.totalorder %s101, 0
      %s104 = sadd.s32 %s103, 1
      %s105 = scalar_select %p102, %s103, %s104
      %p108 = pneg %p102
      %p109 = scmp.eq.s32.totalorder %s16, 1
      %p110 = por %p108, %p109
      %p111 = scmp.ne.s32.totalorder %s103, %s106
      %p112 = scmp.eq.s32.totalorder %s16, 0
      %p113 = por %p111, %p112
      %p114 = scmp.ne.s32.totalorder %s103, %s106
      %p115 = scmp.eq.s32.totalorder %s21, 1
      %p116 = por %p114, %p115
      %p117 = scmp.ne.s32.totalorder %s106, %s107
      %p118 = scmp.eq.s32.totalorder %s21, 0
      %p119 = por %p117, %p118
      %p120 = scmp.ne.s32.totalorder %s106, %s107
      %p121 = scmp.eq.s32.totalorder %s22, 1
      %p122 = por %p120, %p121
      %p124 = scmp.ne.s32.totalorder %s107, %s123
      %p125 = scmp.eq.s32.totalorder %s22, 0
      %p126 = por %p124, %p125
      %s127 = ssub.s32 %s23, %s42
      %s128 = ssub.s32 %s24, %s38
      %s129 = sor.u32 %s127, %s128
      %p130 = scmp.eq.s32.totalorder %s129, 0
      %s132 = sadd.s32 %s131, 1
      %s133 = scalar_select %p130, %s131, %s132
      %p136 = pneg %p130
      %p137 = scmp.eq.s32.totalorder %s16, 1
      %p138 = por %p136, %p137
      %p139 = scmp.ne.s32.totalorder %s131, %s134
      %p140 = scmp.eq.s32.totalorder %s16, 0
      %p141 = por %p139, %p140
      %p142 = scmp.ne.s32.totalorder %s131, %s134
      %p143 = scmp.eq.s32.totalorder %s21, 1
      %p144 = por %p142, %p143
      %p145 = scmp.ne.s32.totalorder %s134, %s135
      %p146 = scmp.eq.s32.totalorder %s21, 0
      %p147 = por %p145, %p146
      %p148 = scmp.ne.s32.totalorder %s134, %s135
      %p149 = scmp.eq.s32.totalorder %s22, 1
      %p150 = por %p148, %p149
      %p152 = scmp.ne.s32.totalorder %s135, %s151
      %p153 = scmp.eq.s32.totalorder %s22, 0
      %p154 = por %p152, %p153
      %s155 = ssub.s32 %s23, %s42
      %s156 = ssub.s32 %s24, %s38
      %s157 = sor.u32 %s155, %s156
      %s158 = ssub.s32 %s25, %s34
      %s159 = sor.u32 %s157, %s158
      %p160 = scmp.eq.s32.totalorder %s159, 0
      %s162 = sadd.s32 %s161, 1
      %s163 = scalar_select %p160, %s161, %s162
      %p166 = pneg %p160
      %p167 = scmp.eq.s32.totalorder %s16, 1
      %p168 = por %p166, %p167
      %p169 = scmp.ne.s32.totalorder %s161, %s164
      %p170 = scmp.eq.s32.totalorder %s16, 0
      %p171 = por %p169, %p170
      %p172 = scmp.ne.s32.totalorder %s161, %s164
      %p173 = scmp.eq.s32.totalorder %s21, 1
      %p174 = por %p172, %p173
      %p175 = scmp.ne.s32.totalorder %s164, %s165
      %p176 = scmp.eq.s32.totalorder %s21, 0
      %p177 = por %p175, %p176
      %p178 = scmp.ne.s32.totalorder %s164, %s165
      %p179 = scmp.eq.s32.totalorder %s22, 1
      %p180 = por %p178, %p179
      %p182 = scmp.ne.s32.totalorder %s165, %s181
      %p183 = scmp.eq.s32.totalorder %s22, 0
      %p184 = por %p182, %p183
      %p185 = scmp.le.s32.totalorder 1, %s16
      %p186 = scmp.lt.s32.totalorder %s16, 3
      %p187 = pnand %p185, %p186
      %p188 = pneg %p187
      // Predicated region
      $region9: #{tpu_custom_call.1} parent=5 // pred_check
        _
      $region10: #{tpu_custom_call.1} parent=5 // pred_check_branch
        %190 = sbr.rel (%p187) target = $region12
      $region11: #{tpu_custom_call.1} parent=5 // pred_region
        %s191 = ssub.s32 %s16, 1
      $region12: #{tpu_custom_call.1} parent=5 // pred_fallthru
        _
      %p192 = scmp.lt.s32.totalorder %s16, 2
      // Predicated region
      $region13: #{tpu_custom_call.1} parent=5 // pred_check
        %p193 = pneg %p192
      $region14: #{tpu_custom_call.1} parent=5 // pred_check_branch
        %195 = sbr.rel (%p193) target = $region16
      $region15: #{tpu_custom_call.1} parent=5 // pred_region
        // Predicated region
        $region17: #{tpu_custom_call.1} parent=15 // pred_check
          %p196 = pneg %p57
        $region18: #{tpu_custom_call.1} parent=15 // pred_check_branch
          %198 = sbr.rel (%p196) target = $region20
        $region19: #{tpu_custom_call.1} parent=15 // pred_region
          %s199 = smul.u32 2, %s24
          %p200 = scmp.lt.s32.totalorder %s23, 1
          %s201 = scalar_select %p200, %s23, 1
          %p202 = scmp.lt.s32.totalorder %s199, 1
          %s203 = scalar_select %p202, %s199, 1
          %s204 = smul.addr %s201, 2
          %s205 = sadd.s32 %s203, %s204
          %s206 = smul.addr %s205, 4
          %s207 = scalar_lea.vmem %s0, %s206
          %s208 = smul.u32 2, %s24
        $region20: #{tpu_custom_call.1} parent=15 // pred_fallthru
          _
        // Predicated region
        $region21: #{tpu_custom_call.1} parent=15 // pred_check
          %p209 = pneg %p85
        $region22: #{tpu_custom_call.1} parent=15 // pred_check_branch
          %211 = sbr.rel (%p209) target = $region24
        $region23: #{tpu_custom_call.1} parent=15 // pred_region
          %s212 = sand.u32 %s75, 1
          %s213 = scalar_lea.sflag [#allocation3], %s212
          %s214 = sand.u32 %s75, 1
          %s215 = smul.addr %s214, 64
          %s216 = scalar_lea.vmem [#allocation2], %s215
          %s218 = ssub.s32 1024, 1024
          %219 = vsyncadd %s213, %s218
          %s220 = smul.addr %s23, 16
          %s221 = sadd.s32 %s25, %s220
          %s222 = smul.addr %s221, 64
          %s223 = scalar_lea.hbm %s1, %s222
          %s224 = sshll.u32 %s216, 4
          %s225 = int_to_ptr.vmem [resolvable:$true] %s224
          %230 = dma.hbm_to_vmem [thread:$0]  %s223, 1024, %s225, %s213, 64, 64, 4
        $region24: #{tpu_custom_call.1} parent=15 // pred_fallthru
          _
        // Predicated region
        $region25: #{tpu_custom_call.1} parent=15 // pred_check
          %p231 = pneg %p113
        $region26: #{tpu_custom_call.1} parent=15 // pred_check_branch
          %233 = sbr.rel (%p231) target = $region28
        $region27: #{tpu_custom_call.1} parent=15 // pred_region
          %p234 = scmp.lt.s32.totalorder %s23, 1
          %s235 = scalar_select %p234, %s23, 1
          %p236 = scmp.lt.s32.totalorder %s25, 0
          %s237 = scalar_select %p236, %s25, 0
          %s238 = sadd.s32 %s237, %s235
          %s239 = scalar_lea.vmem %s2, %s238
        $region28: #{tpu_custom_call.1} parent=15 // pred_fallthru
          _
        // Predicated region
        $region29: #{tpu_custom_call.1} parent=15 // pred_check
          %p240 = pneg %p141
        $region30: #{tpu_custom_call.1} parent=15 // pred_check_branch
          %242 = sbr.rel (%p240) target = $region32
        $region31: #{tpu_custom_call.1} parent=15 // pred_region
          %s243 = smul.u32 2, %s24
          %p244 = scmp.lt.s32.totalorder %s23, 1
          %s245 = scalar_select %p244, %s23, 1
          %p246 = scmp.lt.s32.totalorder %s243, 1
          %s247 = scalar_select %p246, %s243, 1
          %s248 = smul.addr %s245, 2
          %s249 = sadd.s32 %s247, %s248
          %s250 = smul.addr %s249, 8
          %s251 = scalar_lea.vmem %s3, %s250
          %s252 = smul.u32 2, %s24
        $region32: #{tpu_custom_call.1} parent=15 // pred_fallthru
          _
      $region16: #{tpu_custom_call.1} parent=5 // pred_fallthru
        _
      %p253 = scmp.le.s32.totalorder 1, %s16
      %p254 = scmp.lt.s32.totalorder %s16, 3
      %p255 = pnand %p253, %p254
      %p256 = pneg %p255
      // Predicated region
      $region33: #{tpu_custom_call.1} parent=5 // pred_check
        _
      $region34: #{tpu_custom_call.1} parent=5 // pred_check_branch
        %258 = sbr.rel (%p255) target = $region36
      $region35: #{tpu_custom_call.1} parent=5 // pred_region
        %s259 = ssub.s32 %s16, 1
        %s260 = sand.u32 %s78, 1
        %s261 = scalar_lea.sflag [#allocation3], %s260
        %s262 = sand.u32 %s78, 1
        %s263 = smul.addr %s262, 64
        %s264 = scalar_lea.vmem [#allocation2], %s263
        // Predicated region
        $region37: #{tpu_custom_call.1} parent=35 // pred_check
          %p265 = pneg %p91
        $region38: #{tpu_custom_call.1} parent=35 // pred_check_branch
          %267 = sbr.rel (%p265) target = $region40
        $region39: #{tpu_custom_call.1} parent=35 // pred_region
          %268 = dma.done %s261, 1024
        $region40: #{tpu_custom_call.1} parent=35 // pred_fallthru
          _
        %s269 = smul.u32 2, %s27
        %p270 = scmp.lt.s32.totalorder %s26, 1
        %s271 = scalar_select %p270, %s26, 1
        %p272 = scmp.lt.s32.totalorder %s269, 1
        %s273 = scalar_select %p272, %s269, 1
        %s274 = smul.addr %s271, 2
        %s275 = sadd.s32 %s273, %s274
        %s276 = smul.addr %s275, 4
        %s277 = scalar_lea.vmem %s0, %s276
        %p278 = pneg %p63
        %p279 = pneg %p60
        %s280 = sand.u32 %s78, 1
        %s281 = scalar_lea.sflag [#allocation3], %s280
        %s282 = sand.u32 %s78, 1
        %s283 = smul.addr %s282, 64
        %s284 = scalar_lea.vmem [#allocation2], %s283
        %p285 = pneg %p91
        %p286 = pneg %p88
        %p287 = scmp.lt.s32.totalorder %s26, 1
        %s288 = scalar_select %p287, %s26, 1
        %p289 = scmp.lt.s32.totalorder %s28, 0
        %s290 = scalar_select %p289, %s28, 0
        %s291 = sadd.s32 %s290, %s288
        %s292 = scalar_lea.vmem %s2, %s291
        %p293 = pneg %p119
        %p294 = pneg %p116
        %s295 = smul.u32 2, %s27
        %p296 = scmp.lt.s32.totalorder %s26, 1
        %s297 = scalar_select %p296, %s26, 1
        %p298 = scmp.lt.s32.totalorder %s295, 1
        %s299 = scalar_select %p298, %s295, 1
        %s300 = smul.addr %s297, 2
        %s301 = sadd.s32 %s299, %s300
        %s302 = smul.addr %s301, 8
        %s303 = scalar_lea.vmem %s3, %s302
        %p304 = pneg %p147
        %p305 = pneg %p144
        %p306 = pneg %p177
        %p307 = pneg %p174
        %s308 = sand.u32 %s164, 1
        %s309 = scalar_lea.sflag [#allocation4], %s308
        %s310 = sand.u32 %s164, 1
        %s311 = smul.addr %s310, 8
        %s312 = scalar_lea.vmem [#allocation5], %s311
        %s313 = smul.u32 2, %s27
        %p314 = scmp.lt.s32.totalorder %s26, 1
        %s315 = scalar_select %p314, %s26, 1
        %p316 = scmp.lt.s32.totalorder %s313, 1
        %s317 = scalar_select %p316, %s313, 1
        %s318 = smul.addr %s315, 2
        %s319 = sadd.s32 %s317, %s318
        %s320 = smul.addr %s319, 4
        %s321 = scalar_lea.vmem %s0, %s320
        %s322 = smul.u32 2, %s27
        %p323 = scmp.lt.s32.totalorder %s26, 1
        %s324 = scalar_select %p323, %s26, 1
        %p325 = scmp.lt.s32.totalorder %s28, 0
        %s326 = scalar_select %p325, %s28, 0
        %s327 = sadd.s32 %s326, %s324
        %s328 = scalar_lea.vmem %s2, %s327
        %s329 = smul.u32 2, %s27
        %p330 = scmp.lt.s32.totalorder %s26, 1
        %s331 = scalar_select %p330, %s26, 1
        %p332 = scmp.lt.s32.totalorder %s329, 1
        %s333 = scalar_select %p332, %s329, 1
        %s334 = smul.addr %s331, 2
        %s335 = sadd.s32 %s333, %s334
        %s336 = smul.addr %s335, 8
        %s337 = scalar_lea.vmem %s3, %s336
        %s338 = smul.u32 2, %s27
        %s339 = smul.u32 2, %s27
        %v341 = vld [vmem:[%s321] sm:$0xf]
        %v342 = vld [vmem:[%s321 + $0x4] sm:$0xf]
        %v343 = vld [vmem:[%s264] sm:$0xf]
        %v344 = vld [vmem:[%s264 + $0x4] sm:$0xf]
        %v345 = vld [vmem:[%s264 + $0x8] sm:$0xf]
        %v346 = vld [vmem:[%s264 + $0xc] sm:$0xf]
        %v347 = vld [vmem:[%s264 + $0x10] sm:$0xf]
        %v348 = vld [vmem:[%s264 + $0x14] sm:$0xf]
        %v349 = vld [vmem:[%s264 + $0x18] sm:$0xf]
        %v350 = vld [vmem:[%s264 + $0x1c] sm:$0xf]
        %v351 = vld [vmem:[%s264 + $0x20] sm:$0xf]
        %v352 = vld [vmem:[%s264 + $0x24] sm:$0xf]
        %v353 = vld [vmem:[%s264 + $0x28] sm:$0xf]
        %v354 = vld [vmem:[%s264 + $0x2c] sm:$0xf]
        %v355 = vld [vmem:[%s264 + $0x30] sm:$0xf]
        %v356 = vld [vmem:[%s264 + $0x34] sm:$0xf]
        %v357 = vld [vmem:[%s264 + $0x38] sm:$0xf]
        %v358 = vld [vmem:[%s264 + $0x3c] sm:$0xf]
        %v359 = vld [vmem:[%s328] sm:$0x1]
        %v361 = vlaneseq
        %v362 = vshrl.u32 %v361, 7
        %v363 = vsub.s32 0, %v362
        %v364 = vrot.slane %v359, %v363
        %v368 = vunpack.c.l.b16 %v341
        %v369 = vunpack.c.l.b16 %v342
        %v370 = vpack.c.b16 %v369, %v368
        %v388 = vunpack.c.l.b16 %v343
        %v389 = vunpack.c.l.b16 %v344
        %v390 = vunpack.c.l.b16 %v345
        %v391 = vunpack.c.l.b16 %v346
        %v392 = vunpack.c.l.b16 %v347
        %v393 = vunpack.c.l.b16 %v348
        %v394 = vunpack.c.l.b16 %v349
        %v395 = vunpack.c.l.b16 %v350
        %v396 = vunpack.c.l.b16 %v351
        %v397 = vunpack.c.l.b16 %v352
        %v398 = vunpack.c.l.b16 %v353
        %v399 = vunpack.c.l.b16 %v354
        %v400 = vunpack.c.l.b16 %v355
        %v401 = vunpack.c.l.b16 %v356
        %v402 = vunpack.c.l.b16 %v357
        %v403 = vunpack.c.l.b16 %v358
        %v404 = vpack.c.b16 %v389, %v388
        %v405 = vpack.c.b16 %v391, %v390
        %v406 = vpack.c.b16 %v393, %v392
        %v407 = vpack.c.b16 %v395, %v394
        %v408 = vpack.c.b16 %v397, %v396
        %v409 = vpack.c.b16 %v399, %v398
        %v410 = vpack.c.b16 %v401, %v400
        %v411 = vpack.c.b16 %v403, %v402
        %420 = vmatprep.subr.bf16.mxu0 0
        %421 = vmatpush1.bf16.msra.mxu0 %v404
        %422 = vmatprep.subr.bf16.mxu0 0
        %423 = vmatpush1.bf16.msra.mxu0 %v405
        %424 = vmatprep.subr.bf16.mxu0 0
        %425 = vmatpush1.bf16.msra.mxu0 %v406
        %426 = vmatprep.subr.bf16.mxu0 0
        %427 = vmatpush1.bf16.msra.mxu0 %v407
        %428 = vmatprep.subr.bf16.mxu0 0
        %429 = vmatpush1.bf16.msra.mxu0 %v408
        %430 = vmatprep.subr.bf16.mxu0 0
        %431 = vmatpush1.bf16.msra.mxu0 %v409
        %432 = vmatprep.subr.bf16.mxu0 0
        %433 = vmatpush1.bf16.msra.mxu0 %v410
        %434 = vmatprep.subr.bf16.mxu0 0
        %435 = vmatpush1.bf16.msra.mxu0 %v411
        %436 = vmatprep.subr.bf16.mxu0 0
        %437 = vmatpush1.bf16.msra.mxu0 0
        %438 = vmatprep.subr.bf16.mxu0 0
        %439 = vmatpush1.bf16.msra.mxu0 0
        %440 = vmatprep.subr.bf16.mxu0 0
        %441 = vmatpush1.bf16.msra.mxu0 0
        %442 = vmatprep.subr.bf16.mxu0 0
        %443 = vmatpush1.bf16.msra.mxu0 0
        %444 = vmatprep.subr.bf16.mxu0 0
        %445 = vmatpush1.bf16.msra.mxu0 0
        %446 = vmatprep.subr.bf16.mxu0 0
        %447 = vmatpush1.bf16.msra.mxu0 0
        %448 = vmatprep.subr.bf16.mxu0 0
        %449 = vmatpush1.bf16.msra.mxu0 0
        %450 = vmatprep.subr.bf16.mxu0 0
        %451 = vmatpush1.bf16.msra.mxu0 0
        %452 = vmatprep.mubr.bf16.mxu0 0
        %453 = vmatmul.mubr.bf16.gmra.mrb[0].mxu0 %v370
        %v454 = vpop.f32.mrb[0].mxu0
        %v455 = vadd.f32 %v364, %v454
        %v456 = vpop.f32.mrb[0].mxu0
        %v457 = vpop.f32.mrb[0].mxu0
        %v458 = vadd.f32 %v364, %v457
        %v459 = vpop.f32.mrb[0].mxu0
        %460 = vdwg.mxu0
        %v461 = vld [vmem:[%s337] sm:$0xff]
        %v462 = vld [vmem:[%s337 + $0x8] sm:$0xff]
        %464 = vset.pattern.permute.xlu0 0
        %465 = vperm.xlu0 %464, %v461
        %v466 = vpop.permute.xlu0 %465
        %469 = vset.pattern.permute.xlu0 0
        %470 = vperm.xlu0 %469, %v462
        %v471 = vpop.permute.xlu0 %470
        %v473 = vmul.f32 %v455, %v466
        %v474 = vmul.f32 %v458, %v471
        %v475 = vpack.c.bf16 %v474, %v473
        %v477 = vunpack.c.l.b16 %v475
        %v478 = vunpack.c.h.b16 %v475
        %v479 = vpack.c.b16 %v477, %v477
        %v480 = vpack.c.b16 %v478, %v478
        %483 = vst [vmem:[%s312] sm:$0xf] %v479
        %484 = vst [vmem:[%s312 + $0x4] sm:$0xf] %v480
        %s485 = sand.u32 %s164, 1
        %s486 = scalar_lea.sflag [#allocation4], %s485
        %s487 = sand.u32 %s164, 1
        %s488 = smul.addr %s487, 8
        %s489 = scalar_lea.vmem [#allocation5], %s488
        // Predicated region
        $region41: #{tpu_custom_call.1} parent=35 // pred_check
          %p490 = pneg %p174
        $region42: #{tpu_custom_call.1} parent=35 // pred_check_branch
          %492 = sbr.rel (%p490) target = $region44
        $region43: #{tpu_custom_call.1} parent=35 // pred_region
          %s493 = smul.u32 2, %s27
          %s495 = ssub.s32 128, 128
          %496 = vsyncadd %s486, %s495
          %s497 = sadd.s32 %s28, %s493
          %s498 = smul.addr %s26, 2
          %s499 = sadd.s32 %s497, %s498
          %s500 = smul.addr %s499, 64
          %s501 = scalar_lea.hbm %s4, %s500
          %s502 = sshll.u32 %s489, 4
          %s503 = int_to_ptr.vmem [resolvable:$true] %s502
          %508 = dma.vmem_to_hbm [thread:$0]  %s503, 128, %s501, %s486, 64, 64, 4
        $region44: #{tpu_custom_call.1} parent=35 // pred_fallthru
          _
      $region36: #{tpu_custom_call.1} parent=5 // pred_fallthru
        _
      %p509 = scmp.le.s32.totalorder 2, %s16
      // Predicated region
      $region45: #{tpu_custom_call.1} parent=5 // pred_check
        %p510 = pneg %p509
      $region46: #{tpu_custom_call.1} parent=5 // pred_check_branch
        %512 = sbr.rel (%p510) target = $region48
      $region47: #{tpu_custom_call.1} parent=5 // pred_region
        %s513 = ssub.s32 %s16, 2
        // Predicated region
        $region49: #{tpu_custom_call.1} parent=47 // pred_check
          %p514 = pneg %p180
        $region50: #{tpu_custom_call.1} parent=47 // pred_check_branch
          %516 = sbr.rel (%p514) target = $region52
        $region51: #{tpu_custom_call.1} parent=47 // pred_region
          %s517 = sand.u32 %s165, 1
          %s518 = scalar_lea.sflag [#allocation4], %s517
          %s519 = sand.u32 %s165, 1
          %s520 = smul.addr %s519, 8
          %s521 = scalar_lea.vmem [#allocation5], %s520
          %522 = dma.done %s518, 128
        $region52: #{tpu_custom_call.1} parent=47 // pred_fallthru
          _
      $region48: #{tpu_custom_call.1} parent=5 // pred_fallthru
        _
    $region6: #{tpu_custom_call.1} parent=1 // loop_footer
      %s20 = sadd.s32 1, %s16
    $region7: #{tpu_custom_call.1} parent=1 // loop_footer_branch
      %15 = sbr.rel target = $region3
    $region8: #{tpu_custom_call.1} parent=1 // loop_exit
      _
    %523 = vsyncpa [#allocation3], 1
    %s524 = scalar_lea.sflag [#allocation3], 1
    %525 = vsyncpa %s524, 1
    %526 = vsyncpa [#allocation4], 1
    %s527 = scalar_lea.sflag [#allocation4], 1
    %528 = vsyncpa %s527, 1

</llo_original>
